<compile_context>
chip_gen: v7x
topology: tpu7x:2x2x1
jax: 0.10.0
libtpu: 0.0.40
codegen_flags: <defaults>
</compile_context>

<pallas_src>
import jax
import jax.numpy as jnp
from jax import lax
from jax.experimental import pallas as pl
from jax.experimental.pallas import tpu as pltpu


def _mlp_kernel(x_ref,
                w1_ref,
                w2_ref, b2_ref,
                w3_ref, b3_ref,
                w4_ref, b4_ref,
                w5_ref, b5_ref,
                o_ref):
    """One batch tile.

    x_ref  : (TB, Fp) input block in natural (batch, feature) layout.
             Column F holds 1.0 so fc1's bias rides in w1p's padded column.
    w1_ref : (256, Fp) with column F = b1 (bias folded into the matmul).
    Activations are computed transposed (features x batch) so everything,
    including the (1, TB) output row, is lane-dense.
    """
    cdt = w1_ref.dtype  # compute dtype for MXU operands / epilogue (f32 or bf16)

    # fc1 (+ folded bias) + ReLU:
    #   (256, Fp) x (TB, Fp), contracting dim 1 of both -> (256, TB).
    h = lax.dot_general(w1_ref[...], x_ref[...],
                        dimension_numbers=(((1,), (1,)), ((), ())),
                        preferred_element_type=jnp.float32)
    h = jnp.maximum(h.astype(cdt), 0.0)

    # fc2 + ReLU : (128, 256) @ (256, TB)
    h = jnp.dot(w2_ref[...], h, preferred_element_type=jnp.float32)
    h = jnp.maximum(h.astype(cdt) + b2_ref[...], 0.0)

    # fc3 + ReLU : (64, 128) @ (128, TB)
    h = jnp.dot(w3_ref[...], h, preferred_element_type=jnp.float32)
    h = jnp.maximum(h.astype(cdt) + b3_ref[...], 0.0)

    # fc4 + ReLU : (32, 64) @ (64, TB)
    h = jnp.dot(w4_ref[...], h, preferred_element_type=jnp.float32)
    h = jnp.maximum(h.astype(cdt) + b4_ref[...], 0.0)

    # fc5 OFF the MXU: broadcast-mul (VPU) + sublane reduce (XLU), f32.
    #   (32, TB) * (32, 1) -> sum over axis 0 -> (1, TB)
    z = jnp.sum(h * w5_ref[...], axis=0, keepdims=True) + b5_ref[...]

    # Exact sigmoid (z is only (1, TB); the divide is essentially free).
    o_ref[...] = (1.0 / (1.0 + jnp.exp(-z))).astype(o_ref.dtype)


def algorithm_optimizer_nn(x, params, *, compute_dtype=jnp.bfloat16,
                           max_block_b=2048):
    """Forward pass of AlgorithmOptimizerNN as a single Pallas TPU kernel.

    x:      (B, 20) float32.
    params: [(w, b)] * 5 in PyTorch nn.Linear layout: w (out, in), b (out,).
    Returns (B, 1) float32 sigmoid output.
    """
    B, F = x.shape
    (w1, b1), (w2, b2), (w3, b3), (w4, b4), (w5, b5) = params
    cdt = jnp.dtype(compute_dtype)

    # ---- batch tiling: TB is a multiple of 128 (lane width). When the
    # padded batch is >= 256, split into >= 2 grid steps so the "parallel"
    # batch axis can be sharded across both v7x TensorCores (neutral on
    # single-TC v5e/v6e: one extra ~0.35us grid step).
    Bp_min = int(pl.cdiv(B, 128) * 128)
    if Bp_min >= 256:
        TB = int(min(max_block_b, pl.cdiv(pl.cdiv(Bp_min, 2), 128) * 128))
    else:
        TB = int(min(max_block_b, Bp_min))
    TB = max(TB, 128)
    Bp = int(pl.cdiv(B, TB) * TB)
    G = Bp // TB

    # ---- fc1 feature padding 20 -> 32; use the padding to fold in b1:
    # x column F = 1.0, w1p column F = b1.
    Fp = int(pl.cdiv(F + 1, 32) * 32)

    xp = jnp.zeros((Bp, Fp), cdt)
    xp = xp.at[:B, :F].set(x.astype(cdt))
    xp = xp.at[:B, F].set(1.0)

    w1p = (jnp.zeros((w1.shape[0], Fp), jnp.float32)
           .at[:, :F].set(w1)
           .at[:, F].set(b1)).astype(cdt)
    w2c, w3c, w4c = (w.astype(cdt) for w in (w2, w3, w4))
    b2c = b2.reshape(-1, 1).astype(cdt)
    b3c = b3.reshape(-1, 1).astype(cdt)
    b4c = b4.reshape(-1, 1).astype(cdt)
    w5col = w5.reshape(-1, 1).astype(jnp.float32)   # (32, 1), f32 (VPU/XLU dot)
    b5c = b5.reshape(1, 1).astype(jnp.float32)

    weights = [w1p, w2c, b2c, w3c, b3c, w4c, b4c, w5col, b5c]

    const = lambda i: (0, 0)                        # resident weights / biases
    in_specs = [pl.BlockSpec((TB, Fp), lambda i: (i, 0))]
    for a in weights:
        in_specs.append(pl.BlockSpec(a.shape, const))

    # ---- cost hint for the XLA scheduler ----
    mxu_dims = [(int(w1p.shape[0]), Fp), w2.shape, w3.shape, w4.shape]
    flops = 2 * Bp * (sum(int(o) * int(i) for o, i in mxu_dims) + int(w5.shape[1]))
    bytes_accessed = (xp.size * xp.dtype.itemsize
                      + sum(int(a.size) * a.dtype.itemsize for a in weights)
                      + Bp * 4)
    cost = pl.CostEstimate(flops=int(flops), transcendentals=int(Bp),
                           bytes_accessed=int(bytes_accessed))

    # ---- VMEM footprint estimate; only override the scoped limit if the
    # caller raised TB beyond what the smallest (v5e, 16 MiB) default covers.
    act_bytes = TB * (256 + 128 + 64 + 32) * (4 + cdt.itemsize)
    io_bytes = 2 * TB * Fp * cdt.itemsize + 2 * 8 * TB * 4
    w_bytes = 2 * sum(int(a.size) * a.dtype.itemsize for a in weights)
    vmem_est = int(act_bytes + io_bytes + w_bytes)
    vmem_limit = None
    if vmem_est > 12 * 1024 * 1024:
        vmem_limit = int(min(2 * vmem_est, 56 * 1024 * 1024))

    out = pl.pallas_call(
        _mlp_kernel,
        out_shape=jax.ShapeDtypeStruct((1, Bp), jnp.float32),
        grid=(G,),
        in_specs=in_specs,
        out_specs=pl.BlockSpec((1, TB), lambda i: (0, i)),
        compiler_params=pltpu.CompilerParams(
            dimension_semantics=("parallel",),
            vmem_limit_bytes=vmem_limit),
        cost_estimate=cost,
    )(xp, *weights)

    return out[0, :B].reshape(B, 1)


def init_params(key):
    """Deterministic init matching nn.Linear (PyTorch layout: W (out, in))."""
    sizes = [(256, 20), (128, 256), (64, 128), (32, 64), (1, 32)]
    params = []
    for fan_out, fan_in in sizes:
        key, kw, kb = jax.random.split(key, 3)
        bound = 1.0 / jnp.sqrt(fan_in)
        w = jax.random.uniform(kw, (fan_out, fan_in), jnp.float32, -bound, bound)
        b = jax.random.uniform(kb, (fan_out,), jnp.float32, -bound, bound)
        params.append((w, b))
    return params


def reference_forward(x, params):
    """Pure-JAX f32 reference (mirrors the PyTorch module)."""
    h = x
    for i, (w, b) in enumerate(params):
        h = h @ w.T + b
        h = jnp.maximum(h, 0.0) if i < len(params) - 1 else jax.nn.sigmoid(h)
    return h


if __name__ == "__main__":
    key = jax.random.PRNGKey(0)
    key, kx = jax.random.split(key)
    params = init_params(key)

    # Small test batch (feature dim 20 per the module spec).
    B = 8
    x = jax.random.normal(kx, (B, 20), dtype=jnp.float32)
    ref = reference_forward(x, params)

    # f32 operand path (tight check).
    out_f32 = jax.block_until_ready(
        algorithm_optimizer_nn(x, params, compute_dtype=jnp.float32))
    assert out_f32.shape == (B, 1), out_f32.shape
    assert jnp.allclose(out_f32, ref, atol=2e-3, rtol=2e-3), "f32 mismatch"

    # Default bf16 operand path (halves HBM traffic; f32 MXU accumulation).
    out_bf16 = jax.block_until_ready(algorithm_optimizer_nn(x, params))
    assert out_bf16.shape == (B, 1), out_bf16.shape
    assert jnp.allclose(out_bf16, ref, atol=5e-2, rtol=5e-2), "bf16 mismatch"

    # Multi-step batch grid (exercises padding + the "parallel" batch axis).
    B2 = 300
    key, kx2 = jax.random.split(key)
    x2 = jax.random.normal(kx2, (B2, 20), dtype=jnp.float32)
    out2 = jax.block_until_ready(
        algorithm_optimizer_nn(x2, params, compute_dtype=jnp.float32))
    ref2 = reference_forward(x2, params)
    assert out2.shape == (B2, 1), out2.shape
    assert jnp.allclose(out2, ref2, atol=2e-3, rtol=2e-3), "grid mismatch"

    print("KERNEL_OK")
</pallas_src>

<mosaic_0001>
module attributes {stable_mosaic.version = 11 : i64} {
  func.func @_mlp_kernel(%arg0: i32, %arg1: memref<128x32xf32, #tpu.memory_space<vmem>>, %arg2: memref<256x32xf32, #tpu.memory_space<vmem>>, %arg3: memref<128x256xf32, #tpu.memory_space<vmem>>, %arg4: memref<128x1xf32, #tpu.memory_space<vmem>>, %arg5: memref<64x128xf32, #tpu.memory_space<vmem>>, %arg6: memref<64x1xf32, #tpu.memory_space<vmem>>, %arg7: memref<32x64xf32, #tpu.memory_space<vmem>>, %arg8: memref<32x1xf32, #tpu.memory_space<vmem>>, %arg9: memref<32x1xf32, #tpu.memory_space<vmem>>, %arg10: memref<1x1xf32, #tpu.memory_space<vmem>>, %arg11: memref<1x128xf32, #tpu.memory_space<vmem>>) attributes {dimension_semantics = [#tpu.dimension_semantics<parallel>], iteration_bounds = array<i64: 1>, scalar_prefetch = 0 : i64, scratch_operands = 0 : i64, tpu.core_type = #tpu.core_type<tc>, window_params = [{transform_indices = @transform_0, window_bounds = array<i64: 128, 32>}, {pipeline_mode = #tpu.pipeline_mode<synchronous>, transform_indices = @transform_1, window_bounds = array<i64: 256, 32>}, {pipeline_mode = #tpu.pipeline_mode<synchronous>, transform_indices = @transform_2, window_bounds = array<i64: 128, 256>}, {pipeline_mode = #tpu.pipeline_mode<synchronous>, transform_indices = @transform_3, window_bounds = array<i64: 128, 1>}, {pipeline_mode = #tpu.pipeline_mode<synchronous>, transform_indices = @transform_4, window_bounds = array<i64: 64, 128>}, {pipeline_mode = #tpu.pipeline_mode<synchronous>, transform_indices = @transform_5, window_bounds = array<i64: 64, 1>}, {pipeline_mode = #tpu.pipeline_mode<synchronous>, transform_indices = @transform_6, window_bounds = array<i64: 32, 64>}, {pipeline_mode = #tpu.pipeline_mode<synchronous>, transform_indices = @transform_7, window_bounds = array<i64: 32, 1>}, {pipeline_mode = #tpu.pipeline_mode<synchronous>, transform_indices = @transform_8, window_bounds = array<i64: 32, 1>}, {pipeline_mode = #tpu.pipeline_mode<synchronous>, transform_indices = @transform_9, window_bounds = array<i64: 1, 1>}, {transform_indices = @transform_10, window_bounds = array<i64: 1, 128>}]} {
    %c0 = arith.constant 0 : index
    %c0_0 = arith.constant 0 : index
    %0 = vector.load %arg2[%c0, %c0_0] : memref<256x32xf32, #tpu.memory_space<vmem>>, vector<256x32xf32>
    %c0_1 = arith.constant 0 : index
    %c0_2 = arith.constant 0 : index
    %1 = vector.load %arg1[%c0_1, %c0_2] : memref<128x32xf32, #tpu.memory_space<vmem>>, vector<128x32xf32>
    %cst = arith.constant dense<0.000000e+00> : vector<256x128xf32>
    %2 = tpu.matmul %0, %1, %cst {dimension_numbers = #tpu.dot_dimension_numbers<[1], [1], [0], [0], [0, 0, 1, 0], [], []>} : vector<256x32xf32>, vector<128x32xf32>, vector<256x128xf32> -> vector<256x128xf32>
    %cst_3 = arith.constant 0.000000e+00 : f32
    %3 = vector.broadcast %cst_3 : f32 to vector<256x128xf32>
    %4 = arith.maximumf %2, %3 : vector<256x128xf32>
    %c0_4 = arith.constant 0 : index
    %c0_5 = arith.constant 0 : index
    %5 = vector.load %arg3[%c0_4, %c0_5] : memref<128x256xf32, #tpu.memory_space<vmem>>, vector<128x256xf32>
    %cst_6 = arith.constant dense<0.000000e+00> : vector<128x128xf32>
    %6 = tpu.matmul %5, %4, %cst_6 {dimension_numbers = #tpu.dot_dimension_numbers<[1], [0], [0], [1], [0, 0, 1, 1], [], []>} : vector<128x256xf32>, vector<256x128xf32>, vector<128x128xf32> -> vector<128x128xf32>
    %c0_7 = arith.constant 0 : index
    %c0_8 = arith.constant 0 : index
    %7 = vector.load %arg4[%c0_7, %c0_8] : memref<128x1xf32, #tpu.memory_space<vmem>>, vector<128x1xf32>
    %8 = vector.broadcast %7 : vector<128x1xf32> to vector<128x128xf32>
    %9 = arith.addf %6, %8 : vector<128x128xf32>
    %cst_9 = arith.constant 0.000000e+00 : f32
    %10 = vector.broadcast %cst_9 : f32 to vector<128x128xf32>
    %11 = arith.maximumf %9, %10 : vector<128x128xf32>
    %c0_10 = arith.constant 0 : index
    %c0_11 = arith.constant 0 : index
    %12 = vector.load %arg5[%c0_10, %c0_11] : memref<64x128xf32, #tpu.memory_space<vmem>>, vector<64x128xf32>
    %cst_12 = arith.constant dense<0.000000e+00> : vector<64x128xf32>
    %13 = tpu.matmul %12, %11, %cst_12 {dimension_numbers = #tpu.dot_dimension_numbers<[1], [0], [0], [1], [0, 0, 1, 1], [], []>} : vector<64x128xf32>, vector<128x128xf32>, vector<64x128xf32> -> vector<64x128xf32>
    %c0_13 = arith.constant 0 : index
    %c0_14 = arith.constant 0 : index
    %14 = vector.load %arg6[%c0_13, %c0_14] : memref<64x1xf32, #tpu.memory_space<vmem>>, vector<64x1xf32>
    %15 = vector.broadcast %14 : vector<64x1xf32> to vector<64x128xf32>
    %16 = arith.addf %13, %15 : vector<64x128xf32>
    %cst_15 = arith.constant 0.000000e+00 : f32
    %17 = vector.broadcast %cst_15 : f32 to vector<64x128xf32>
    %18 = arith.maximumf %16, %17 : vector<64x128xf32>
    %c0_16 = arith.constant 0 : index
    %c0_17 = arith.constant 0 : index
    %19 = vector.load %arg7[%c0_16, %c0_17] : memref<32x64xf32, #tpu.memory_space<vmem>>, vector<32x64xf32>
    %cst_18 = arith.constant dense<0.000000e+00> : vector<32x128xf32>
    %20 = tpu.matmul %19, %18, %cst_18 {dimension_numbers = #tpu.dot_dimension_numbers<[1], [0], [0], [1], [0, 0, 1, 1], [], []>} : vector<32x64xf32>, vector<64x128xf32>, vector<32x128xf32> -> vector<32x128xf32>
    %c0_19 = arith.constant 0 : index
    %c0_20 = arith.constant 0 : index
    %21 = vector.load %arg8[%c0_19, %c0_20] : memref<32x1xf32, #tpu.memory_space<vmem>>, vector<32x1xf32>
    %22 = vector.broadcast %21 : vector<32x1xf32> to vector<32x128xf32>
    %23 = arith.addf %20, %22 : vector<32x128xf32>
    %cst_21 = arith.constant 0.000000e+00 : f32
    %24 = vector.broadcast %cst_21 : f32 to vector<32x128xf32>
    %25 = arith.maximumf %23, %24 : vector<32x128xf32>
    %c0_22 = arith.constant 0 : index
    %c0_23 = arith.constant 0 : index
    %26 = vector.load %arg9[%c0_22, %c0_23] : memref<32x1xf32, #tpu.memory_space<vmem>>, vector<32x1xf32>
    %27 = vector.broadcast %26 : vector<32x1xf32> to vector<32x128xf32>
    %28 = arith.mulf %25, %27 : vector<32x128xf32>
    %cst_24 = arith.constant dense<0.000000e+00> : vector<128xf32>
    %29 = vector.multi_reduction <add>, %28, %cst_24 [0] : vector<32x128xf32> to vector<128xf32>
    %30 = vector.shape_cast %29 : vector<128xf32> to vector<1x128xf32>
    %c0_25 = arith.constant 0 : index
    %c0_26 = arith.constant 0 : index
    %31 = vector.load %arg10[%c0_25, %c0_26] : memref<1x1xf32, #tpu.memory_space<vmem>>, vector<1x1xf32>
    %32 = vector.broadcast %31 : vector<1x1xf32> to vector<1x128xf32>
    %33 = arith.addf %30, %32 : vector<1x128xf32>
    %cst_27 = arith.constant 0.000000e+00 : f32
    %34 = vector.broadcast %cst_27 : f32 to vector<1x128xf32>
    %35 = arith.subf %34, %33 : vector<1x128xf32>
    %36 = math.exp %35 : vector<1x128xf32>
    %cst_28 = arith.constant 1.000000e+00 : f32
    %37 = vector.broadcast %cst_28 : f32 to vector<1x128xf32>
    %38 = arith.addf %37, %36 : vector<1x128xf32>
    %cst_29 = arith.constant 1.000000e+00 : f32
    %39 = vector.broadcast %cst_29 : f32 to vector<1x128xf32>
    %40 = arith.divf %39, %38 : vector<1x128xf32>
    %c0_30 = arith.constant 0 : index
    %c0_31 = arith.constant 0 : index
    %41 = vector.load %arg11[%c0_30, %c0_31] : memref<1x128xf32, #tpu.memory_space<vmem>>, vector<1x128xf32>
    tpu.vector_store %arg11[%c0_30, %c0_31], %40 {strides = array<i32>} : memref<1x128xf32, #tpu.memory_space<vmem>>, vector<1x128xf32>,
    return
  }
  func.func @transform_0(%arg0: i32) -> (i32, i32) {
    %c0_i32 = arith.constant 0 : i32
    %c0_i32_0 = arith.constant 0 : i32
    return %arg0, %c0_i32 : i32, i32
  }
  func.func @transform_1(%arg0: i32) -> (i32, i32) {
    %c0_i32 = arith.constant 0 : i32
    %c0_i32_0 = arith.constant 0 : i32
    %c0_i32_1 = arith.constant 0 : i32
    return %c0_i32, %c0_i32_0 : i32, i32
  }
  func.func @transform_2(%arg0: i32) -> (i32, i32) {
    %c0_i32 = arith.constant 0 : i32
    %c0_i32_0 = arith.constant 0 : i32
    %c0_i32_1 = arith.constant 0 : i32
    return %c0_i32, %c0_i32_0 : i32, i32
  }
  func.func @transform_3(%arg0: i32) -> (i32, i32) {
    %c0_i32 = arith.constant 0 : i32
    %c0_i32_0 = arith.constant 0 : i32
    %c0_i32_1 = arith.constant 0 : i32
    return %c0_i32, %c0_i32_0 : i32, i32
  }
  func.func @transform_4(%arg0: i32) -> (i32, i32) {
    %c0_i32 = arith.constant 0 : i32
    %c0_i32_0 = arith.constant 0 : i32
    %c0_i32_1 = arith.constant 0 : i32
    return %c0_i32, %c0_i32_0 : i32, i32
  }
  func.func @transform_5(%arg0: i32) -> (i32, i32) {
    %c0_i32 = arith.constant 0 : i32
    %c0_i32_0 = arith.constant 0 : i32
    %c0_i32_1 = arith.constant 0 : i32
    return %c0_i32, %c0_i32_0 : i32, i32
  }
  func.func @transform_6(%arg0: i32) -> (i32, i32) {
    %c0_i32 = arith.constant 0 : i32
    %c0_i32_0 = arith.constant 0 : i32
    %c0_i32_1 = arith.constant 0 : i32
    return %c0_i32, %c0_i32_0 : i32, i32
  }
  func.func @transform_7(%arg0: i32) -> (i32, i32) {
    %c0_i32 = arith.constant 0 : i32
    %c0_i32_0 = arith.constant 0 : i32
    %c0_i32_1 = arith.constant 0 : i32
    return %c0_i32, %c0_i32_0 : i32, i32
  }
  func.func @transform_8(%arg0: i32) -> (i32, i32) {
    %c0_i32 = arith.constant 0 : i32
    %c0_i32_0 = arith.constant 0 : i32
    %c0_i32_1 = arith.constant 0 : i32
    return %c0_i32, %c0_i32_0 : i32, i32
  }
  func.func @transform_9(%arg0: i32) -> (i32, i32) {
    %c0_i32 = arith.constant 0 : i32
    %c0_i32_0 = arith.constant 0 : i32
    %c0_i32_1 = arith.constant 0 : i32
    return %c0_i32, %c0_i32_0 : i32, i32
  }
  func.func @transform_10(%arg0: i32) -> (i32, i32) {
    %c0_i32 = arith.constant 0 : i32
    %c0_i32_0 = arith.constant 0 : i32
    return %c0_i32, %arg0 : i32, i32
  }
}

</mosaic_0001>

<llo_original>
// kernel: tpu_custom_call.1
$region0: #{tpu_custom_call.1}
  #allocation0 [shape = 'u32[]', space=smem, size = 0x4, offset = 0x4, fixed_abs, tag = 'smem constant byte address 0x4 - core index']
  #allocation1 [shape = 'u32[144,128]{1,0:T(1,128)}', space=vmem, size = 0x12000, scoped, tag = 'internal scratch']
  #allocation2 [shape = 'f32[1,1]{1,0:T(1,128)S(1)}', space=vmem, size = 0x200, scoped, tag = 'scoped memory for tpu_custom_call.1']
  %s0 = inlined_call_operand.vmem [shape: f32[128,32], index: 0, kind: input, shape index: {}]
  %s1 = inlined_call_operand.vmem [shape: f32[256,32], index: 1, kind: input, shape index: {}]
  %s2 = inlined_call_operand.vmem [shape: f32[128,256], index: 2, kind: input, shape index: {}]
  %s3 = inlined_call_operand.vmem [shape: f32[128,1], index: 3, kind: input, shape index: {}]
  %s4 = inlined_call_operand.vmem [shape: f32[64,128], index: 4, kind: input, shape index: {}]
  %s5 = inlined_call_operand.vmem [shape: f32[64,1], index: 5, kind: input, shape index: {}]
  %s6 = inlined_call_operand.vmem [shape: f32[32,64], index: 6, kind: input, shape index: {}]
  %s7 = inlined_call_operand.vmem [shape: f32[32,1], index: 7, kind: input, shape index: {}]
  %s8 = inlined_call_operand.vmem [shape: f32[32,1], index: 8, kind: input, shape index: {}]
  %s9 = inlined_call_operand.<no memory space> [shape: f32[1,1], index: 9, kind: input, shape index: {}]
  %s10 = inlined_call_operand.hbm [shape: f32[1,128], index: 10, kind: output, shape index: {}]
  %s11 = sld [smem:[#allocation0]]
  $region50: #{tpu_custom_call.1} parent=0
    _
  %s13 = ssub.s32 1, %s11
  %s14 = scalar_select 0, %s13, %s11
  %v15 = vstv %s9
  %16 = vst [vmem:[#allocation2] sm:$0x1] %v15
  $region1: #{tpu_custom_call.1} parent=0
    #allocation3 [shape = 'u8[512]{0}', space=vmem, size = 0x400, scoped, tag = 'output window, operand 0, single buffered']
    #allocation4 [shape = 's32[1]{0}', space=sflag, size = 0x4, scoped, tag = 'scoped memory for tpu_custom_call.1']
    %17 = vsyncpa [#allocation4], 0
    // Predicated region
    $region2: #{tpu_custom_call.1} parent=1 // pred_check
      _
    $region3: #{tpu_custom_call.1} parent=1 // pred_check_branch
      %19 = sbr.rel (0) target = $region5
    $region4: #{tpu_custom_call.1} parent=1 // pred_region
      _
    $region5: #{tpu_custom_call.1} parent=1 // pred_fallthru
      _
    // Predicated region
    $region6: #{tpu_custom_call.1} parent=1 // pred_check
      _
    $region7: #{tpu_custom_call.1} parent=1 // pred_check_branch
      %21 = sbr.rel (0) target = $region9
    $region8: #{tpu_custom_call.1} parent=1 // pred_region
      _
    $region9: #{tpu_custom_call.1} parent=1 // pred_fallthru
      _
    // Predicated region
    $region10: #{tpu_custom_call.1} parent=1 // pred_check
      _
    $region11: #{tpu_custom_call.1} parent=1 // pred_check_branch
      %23 = sbr.rel (0) target = $region13
    $region12: #{tpu_custom_call.1} parent=1 // pred_region
      _
    $region13: #{tpu_custom_call.1} parent=1 // pred_fallthru
      _
    // Predicated region
    $region14: #{tpu_custom_call.1} parent=1 // pred_check
      _
    $region15: #{tpu_custom_call.1} parent=1 // pred_check_branch
      %25 = sbr.rel (0) target = $region17
    $region16: #{tpu_custom_call.1} parent=1 // pred_region
      _
    $region17: #{tpu_custom_call.1} parent=1 // pred_fallthru
      _
    // Predicated region
    $region18: #{tpu_custom_call.1} parent=1 // pred_check
      _
    $region19: #{tpu_custom_call.1} parent=1 // pred_check_branch
      %27 = sbr.rel (0) target = $region21
    $region20: #{tpu_custom_call.1} parent=1 // pred_region
      _
    $region21: #{tpu_custom_call.1} parent=1 // pred_fallthru
      _
    // Predicated region
    $region22: #{tpu_custom_call.1} parent=1 // pred_check
      _
    $region23: #{tpu_custom_call.1} parent=1 // pred_check_branch
      %29 = sbr.rel (0) target = $region25
    $region24: #{tpu_custom_call.1} parent=1 // pred_region
      _
    $region25: #{tpu_custom_call.1} parent=1 // pred_fallthru
      _
    // Predicated region
    $region26: #{tpu_custom_call.1} parent=1 // pred_check
      _
    $region27: #{tpu_custom_call.1} parent=1 // pred_check_branch
      %31 = sbr.rel (0) target = $region29
    $region28: #{tpu_custom_call.1} parent=1 // pred_region
      _
    $region29: #{tpu_custom_call.1} parent=1 // pred_fallthru
      _
    // Predicated region
    $region30: #{tpu_custom_call.1} parent=1 // pred_check
      _
    $region31: #{tpu_custom_call.1} parent=1 // pred_check_branch
      %33 = sbr.rel (0) target = $region33
    $region32: #{tpu_custom_call.1} parent=1 // pred_region
      _
    $region33: #{tpu_custom_call.1} parent=1 // pred_fallthru
      _
    // Predicated region
    $region34: #{tpu_custom_call.1} parent=1 // pred_check
      _
    $region35: #{tpu_custom_call.1} parent=1 // pred_check_branch
      %35 = sbr.rel (0) target = $region37
    $region36: #{tpu_custom_call.1} parent=1 // pred_region
      _
    $region37: #{tpu_custom_call.1} parent=1 // pred_fallthru
      _
    // Predicated region
    $region38: #{tpu_custom_call.1} parent=1 // pred_check
      _
    $region39: #{tpu_custom_call.1} parent=1 // pred_check_branch
      %37 = sbr.rel (0) target = $region41
    $region40: #{tpu_custom_call.1} parent=1 // pred_region
      _
    $region41: #{tpu_custom_call.1} parent=1 // pred_fallthru
      _
    %v38 = vld [vmem:[%s1] sm:$0xff]
    %v39 = vld [vmem:[%s1 + $0x8] sm:$0xff]
    %v40 = vld [vmem:[%s1 + $0x10] sm:$0xff]
    %v41 = vld [vmem:[%s1 + $0x18] sm:$0xff]
    %v42 = vld [vmem:[%s1 + $0x20] sm:$0xff]
    %v43 = vld [vmem:[%s1 + $0x28] sm:$0xff]
    %v44 = vld [vmem:[%s1 + $0x30] sm:$0xff]
    %v45 = vld [vmem:[%s1 + $0x38] sm:$0xff]
    %v46 = vld [vmem:[%s1 + $0x40] sm:$0xff]
    %v47 = vld [vmem:[%s1 + $0x48] sm:$0xff]
    %v48 = vld [vmem:[%s1 + $0x50] sm:$0xff]
    %v49 = vld [vmem:[%s1 + $0x58] sm:$0xff]
    %v50 = vld [vmem:[%s1 + $0x60] sm:$0xff]
    %v51 = vld [vmem:[%s1 + $0x68] sm:$0xff]
    %v52 = vld [vmem:[%s1 + $0x70] sm:$0xff]
    %v53 = vld [vmem:[%s1 + $0x78] sm:$0xff]
    %v54 = vld [vmem:[%s1 + $0x80] sm:$0xff]
    %v55 = vld [vmem:[%s1 + $0x88] sm:$0xff]
    %v56 = vld [vmem:[%s1 + $0x90] sm:$0xff]
    %v57 = vld [vmem:[%s1 + $0x98] sm:$0xff]
    %v58 = vld [vmem:[%s1 + $0xa0] sm:$0xff]
    %v59 = vld [vmem:[%s1 + $0xa8] sm:$0xff]
    %v60 = vld [vmem:[%s1 + $0xb0] sm:$0xff]
    %v61 = vld [vmem:[%s1 + $0xb8] sm:$0xff]
    %v62 = vld [vmem:[%s1 + $0xc0] sm:$0xff]
    %v63 = vld [vmem:[%s1 + $0xc8] sm:$0xff]
    %v64 = vld [vmem:[%s1 + $0xd0] sm:$0xff]
    %v65 = vld [vmem:[%s1 + $0xd8] sm:$0xff]
    %v66 = vld [vmem:[%s1 + $0xe0] sm:$0xff]
    %v67 = vld [vmem:[%s1 + $0xe8] sm:$0xff]
    %v68 = vld [vmem:[%s1 + $0xf0] sm:$0xff]
    %v69 = vld [vmem:[%s1 + $0xf8] sm:$0xff]
    %v70 = vld [vmem:[%s0] sm:$0xff]
    %v71 = vld [vmem:[%s0 + $0x8] sm:$0xff]
    %v72 = vld [vmem:[%s0 + $0x10] sm:$0xff]
    %v73 = vld [vmem:[%s0 + $0x18] sm:$0xff]
    %v74 = vld [vmem:[%s0 + $0x20] sm:$0xff]
    %v75 = vld [vmem:[%s0 + $0x28] sm:$0xff]
    %v76 = vld [vmem:[%s0 + $0x30] sm:$0xff]
    %v77 = vld [vmem:[%s0 + $0x38] sm:$0xff]
    %v78 = vld [vmem:[%s0 + $0x40] sm:$0xff]
    %v79 = vld [vmem:[%s0 + $0x48] sm:$0xff]
    %v80 = vld [vmem:[%s0 + $0x50] sm:$0xff]
    %v81 = vld [vmem:[%s0 + $0x58] sm:$0xff]
    %v82 = vld [vmem:[%s0 + $0x60] sm:$0xff]
    %v83 = vld [vmem:[%s0 + $0x68] sm:$0xff]
    %v84 = vld [vmem:[%s0 + $0x70] sm:$0xff]
    %v85 = vld [vmem:[%s0 + $0x78] sm:$0xff]
    %vm86 = vcmask 261120
    %v88 = vsel %vm86, %v38, 0
    %v91 = vsel %vm86, %v39, 0
    %v94 = vsel %vm86, %v40, 0
    %v97 = vsel %vm86, %v41, 0
    %v100 = vsel %vm86, %v42, 0
    %v103 = vsel %vm86, %v43, 0
    %v106 = vsel %vm86, %v44, 0
    %v109 = vsel %vm86, %v45, 0
    %v112 = vsel %vm86, %v46, 0
    %v115 = vsel %vm86, %v47, 0
    %v118 = vsel %vm86, %v48, 0
    %v121 = vsel %vm86, %v49, 0
    %v124 = vsel %vm86, %v50, 0
    %v127 = vsel %vm86, %v51, 0
    %v130 = vsel %vm86, %v52, 0
    %v133 = vsel %vm86, %v53, 0
    %v136 = vsel %vm86, %v54, 0
    %v139 = vsel %vm86, %v55, 0
    %v142 = vsel %vm86, %v56, 0
    %v145 = vsel %vm86, %v57, 0
    %v148 = vsel %vm86, %v58, 0
    %v151 = vsel %vm86, %v59, 0
    %v154 = vsel %vm86, %v60, 0
    %v157 = vsel %vm86, %v61, 0
    %v160 = vsel %vm86, %v62, 0
    %v163 = vsel %vm86, %v63, 0
    %v166 = vsel %vm86, %v64, 0
    %v169 = vsel %vm86, %v65, 0
    %v172 = vsel %vm86, %v66, 0
    %v175 = vsel %vm86, %v67, 0
    %v178 = vsel %vm86, %v68, 0
    %v181 = vsel %vm86, %v69, 0
    %v184 = vsel %vm86, %v70, 0
    %v187 = vsel %vm86, %v71, 0
    %v190 = vsel %vm86, %v72, 0
    %v193 = vsel %vm86, %v73, 0
    %v196 = vsel %vm86, %v74, 0
    %v199 = vsel %vm86, %v75, 0
    %v202 = vsel %vm86, %v76, 0
    %v205 = vsel %vm86, %v77, 0
    %v208 = vsel %vm86, %v78, 0
    %v211 = vsel %vm86, %v79, 0
    %v214 = vsel %vm86, %v80, 0
    %v217 = vsel %vm86, %v81, 0
    %v220 = vsel %vm86, %v82, 0
    %v223 = vsel %vm86, %v83, 0
    %v226 = vsel %vm86, %v84, 0
    %v229 = vsel %vm86, %v85, 0
    %231 = vmatprep.subr.mxu0 0.0
    %232 = vmatpush1.xpose.msra.mxu0 %v184
    %233 = vmatprep.subr.mxu0 0.0
    %234 = vmatpush1.xpose.msra.mxu0 %v187
    %235 = vmatprep.subr.mxu0 0.0
    %236 = vmatpush1.xpose.msra.mxu0 %v190
    %237 = vmatprep.subr.mxu0 0.0
    %238 = vmatpush1.xpose.msra.mxu0 %v193
    %239 = vmatprep.subr.mxu0 0.0
    %240 = vmatpush1.xpose.msra.mxu0 %v196
    %241 = vmatprep.subr.mxu0 0.0
    %242 = vmatpush1.xpose.msra.mxu0 %v199
    %243 = vmatprep.subr.mxu0 0.0
    %244 = vmatpush1.xpose.msra.mxu0 %v202
    %245 = vmatprep.subr.mxu0 0.0
    %246 = vmatpush1.xpose.msra.mxu0 %v205
    %247 = vmatprep.subr.mxu0 0.0
    %248 = vmatpush1.xpose.msra.mxu0 %v208
    %249 = vmatprep.subr.mxu0 0.0
    %250 = vmatpush1.xpose.msra.mxu0 %v211
    %251 = vmatprep.subr.mxu0 0.0
    %252 = vmatpush1.xpose.msra.mxu0 %v214
    %253 = vmatprep.subr.mxu0 0.0
    %254 = vmatpush1.xpose.msra.mxu0 %v217
    %255 = vmatprep.subr.mxu0 0.0
    %256 = vmatpush1.xpose.msra.mxu0 %v220
    %257 = vmatprep.subr.mxu0 0.0
    %258 = vmatpush1.xpose.msra.mxu0 %v223
    %259 = vmatprep.subr.mxu0 0.0
    %260 = vmatpush1.xpose.msra.mxu0 %v226
    %261 = vmatprep.subr.mxu0 0.0
    %262 = vmatpush1.xpose.msra.mxu0 %v229
    %263 = vmatprep.subr.mxu0 0.0
    %264 = vmatpush1.xpose.msra.mxu0 0.0
    %265 = vmatprep.subr.mxu0 0.0
    %266 = vmatpush1.xpose.msra.mxu0 0.0
    %267 = vmatprep.subr.mxu0 0.0
    %268 = vmatpush1.xpose.msra.mxu0 0.0
    %269 = vmatprep.subr.mxu0 0.0
    %270 = vmatpush1.xpose.msra.mxu0 0.0
    %271 = vmatprep.subr.mxu0 0.0
    %272 = vmatpush1.xpose.msra.mxu0 0.0
    %273 = vmatprep.subr.mxu0 0.0
    %274 = vmatpush1.xpose.msra.mxu0 0.0
    %275 = vmatprep.subr.mxu0 0.0
    %276 = vmatpush1.xpose.msra.mxu0 0.0
    %277 = vmatprep.subr.mxu0 0.0
    %278 = vmatpush1.xpose.msra.mxu0 0.0
    %279 = vmatprep.subr.mxu0 0.0
    %280 = vmatpush1.xpose.msra.mxu0 0.0
    %281 = vmatprep.subr.mxu0 0.0
    %282 = vmatpush1.xpose.msra.mxu0 0.0
    %283 = vmatprep.subr.mxu0 0.0
    %284 = vmatpush1.xpose.msra.mxu0 0.0
    %285 = vmatprep.subr.mxu0 0.0
    %286 = vmatpush1.xpose.msra.mxu0 0.0
    %287 = vmatprep.subr.mxu0 0.0
    %288 = vmatpush1.xpose.msra.mxu0 0.0
    %289 = vmatprep.subr.mxu0 0.0
    %290 = vmatpush1.xpose.msra.mxu0 0.0
    %291 = vmatprep.subr.mxu0 0.0
    %292 = vmatpush1.xpose.msra.mxu0 0.0
    %293 = vmatprep.subr.mxu0 0.0
    %294 = vmatpush1.xpose.msra.mxu0 0.0
    %295 = vmatprep.mubr.f32.mxu0 0.0
    %296 = vmatmul.mubr.f32.gmra.mrb[0].mxu0 %v88
    %v297 = vpop.f32.mrb[0].mxu0
    %v298 = vadd.f32 0.0, %v297
    %v299 = vpop.f32.mrb[0].mxu0
    %300 = vmatprep.mubr.f32.mxu0 0.0
    %301 = vmatmul.mubr.f32.gmra.mrb[0].mxu0 %v91
    %v302 = vpop.f32.mrb[0].mxu0
    %v303 = vadd.f32 0.0, %v302
    %v304 = vpop.f32.mrb[0].mxu0
    %305 = vmatprep.mubr.f32.mxu0 0.0
    %306 = vmatmul.mubr.f32.gmra.mrb[0].mxu0 %v94
    %v307 = vpop.f32.mrb[0].mxu0
    %v308 = vadd.f32 0.0, %v307
    %v309 = vpop.f32.mrb[0].mxu0
    %310 = vmatprep.mubr.f32.mxu0 0.0
    %311 = vmatmul.mubr.f32.gmra.mrb[0].mxu0 %v97
    %v312 = vpop.f32.mrb[0].mxu0
    %v313 = vadd.f32 0.0, %v312
    %v314 = vpop.f32.mrb[0].mxu0
    %315 = vmatprep.mubr.f32.mxu0 0.0
    %316 = vmatmul.mubr.f32.gmra.mrb[0].mxu0 %v100
    %v317 = vpop.f32.mrb[0].mxu0
    %v318 = vadd.f32 0.0, %v317
    %v319 = vpop.f32.mrb[0].mxu0
    %320 = vmatprep.mubr.f32.mxu0 0.0
    %321 = vmatmul.mubr.f32.gmra.mrb[0].mxu0 %v103
    %v322 = vpop.f32.mrb[0].mxu0
    %v323 = vadd.f32 0.0, %v322
    %v324 = vpop.f32.mrb[0].mxu0
    %325 = vmatprep.mubr.f32.mxu0 0.0
    %326 = vmatmul.mubr.f32.gmra.mrb[0].mxu0 %v106
    %v327 = vpop.f32.mrb[0].mxu0
    %v328 = vadd.f32 0.0, %v327
    %v329 = vpop.f32.mrb[0].mxu0
    %330 = vmatprep.mubr.f32.mxu0 0.0
    %331 = vmatmul.mubr.f32.gmra.mrb[0].mxu0 %v109
    %v332 = vpop.f32.mrb[0].mxu0
    %v333 = vadd.f32 0.0, %v332
    %v334 = vpop.f32.mrb[0].mxu0
    %335 = vmatprep.mubr.f32.mxu0 0.0
    %336 = vmatmul.mubr.f32.gmra.mrb[0].mxu0 %v112
    %v337 = vpop.f32.mrb[0].mxu0
    %v338 = vadd.f32 0.0, %v337
    %v339 = vpop.f32.mrb[0].mxu0
    %340 = vmatprep.mubr.f32.mxu0 0.0
    %341 = vmatmul.mubr.f32.gmra.mrb[0].mxu0 %v115
    %v342 = vpop.f32.mrb[0].mxu0
    %v343 = vadd.f32 0.0, %v342
    %v344 = vpop.f32.mrb[0].mxu0
    %345 = vmatprep.mubr.f32.mxu0 0.0
    %346 = vmatmul.mubr.f32.gmra.mrb[0].mxu0 %v118
    %v347 = vpop.f32.mrb[0].mxu0
    %v348 = vadd.f32 0.0, %v347
    %v349 = vpop.f32.mrb[0].mxu0
    %350 = vmatprep.mubr.f32.mxu0 0.0
    %351 = vmatmul.mubr.f32.gmra.mrb[0].mxu0 %v121
    %v352 = vpop.f32.mrb[0].mxu0
    %v353 = vadd.f32 0.0, %v352
    %v354 = vpop.f32.mrb[0].mxu0
    %355 = vmatprep.mubr.f32.mxu0 0.0
    %356 = vmatmul.mubr.f32.gmra.mrb[0].mxu0 %v124
    %v357 = vpop.f32.mrb[0].mxu0
    %v358 = vadd.f32 0.0, %v357
    %v359 = vpop.f32.mrb[0].mxu0
    %360 = vmatprep.mubr.f32.mxu0 0.0
    %361 = vmatmul.mubr.f32.gmra.mrb[0].mxu0 %v127
    %v362 = vpop.f32.mrb[0].mxu0
    %v363 = vadd.f32 0.0, %v362
    %v364 = vpop.f32.mrb[0].mxu0
    %365 = vmatprep.mubr.f32.mxu0 0.0
    %366 = vmatmul.mubr.f32.gmra.mrb[0].mxu0 %v130
    %v367 = vpop.f32.mrb[0].mxu0
    %v368 = vadd.f32 0.0, %v367
    %v369 = vpop.f32.mrb[0].mxu0
    %370 = vmatprep.mubr.f32.mxu0 0.0
    %371 = vmatmul.mubr.f32.gmra.mrb[0].mxu0 %v133
    %v372 = vpop.f32.mrb[0].mxu0
    %v373 = vadd.f32 0.0, %v372
    %v374 = vpop.f32.mrb[0].mxu0
    %375 = vmatprep.mubr.f32.mxu0 0.0
    %376 = vmatmul.mubr.f32.gmra.mrb[0].mxu0 %v136
    %v377 = vpop.f32.mrb[0].mxu0
    %v378 = vadd.f32 0.0, %v377
    %v379 = vpop.f32.mrb[0].mxu0
    %380 = vmatprep.mubr.f32.mxu0 0.0
    %381 = vmatmul.mubr.f32.gmra.mrb[0].mxu0 %v139
    %v382 = vpop.f32.mrb[0].mxu0
    %v383 = vadd.f32 0.0, %v382
    %v384 = vpop.f32.mrb[0].mxu0
    %385 = vmatprep.mubr.f32.mxu0 0.0
    %386 = vmatmul.mubr.f32.gmra.mrb[0].mxu0 %v142
    %v387 = vpop.f32.mrb[0].mxu0
    %v388 = vadd.f32 0.0, %v387
    %v389 = vpop.f32.mrb[0].mxu0
    %390 = vmatprep.mubr.f32.mxu0 0.0
    %391 = vmatmul.mubr.f32.gmra.mrb[0].mxu0 %v145
    %v392 = vpop.f32.mrb[0].mxu0
    %v393 = vadd.f32 0.0, %v392
    %v394 = vpop.f32.mrb[0].mxu0
    %395 = vmatprep.mubr.f32.mxu0 0.0
    %396 = vmatmul.mubr.f32.gmra.mrb[0].mxu0 %v148
    %v397 = vpop.f32.mrb[0].mxu0
    %v398 = vadd.f32 0.0, %v397
    %v399 = vpop.f32.mrb[0].mxu0
    %400 = vmatprep.mubr.f32.mxu0 0.0
    %401 = vmatmul.mubr.f32.gmra.mrb[0].mxu0 %v151
    %v402 = vpop.f32.mrb[0].mxu0
    %v403 = vadd.f32 0.0, %v402
    %v404 = vpop.f32.mrb[0].mxu0
    %405 = vmatprep.mubr.f32.mxu0 0.0
    %406 = vmatmul.mubr.f32.gmra.mrb[0].mxu0 %v154
    %v407 = vpop.f32.mrb[0].mxu0
    %v408 = vadd.f32 0.0, %v407
    %v409 = vpop.f32.mrb[0].mxu0
    %410 = vmatprep.mubr.f32.mxu0 0.0
    %411 = vmatmul.mubr.f32.gmra.mrb[0].mxu0 %v157
    %v412 = vpop.f32.mrb[0].mxu0
    %v413 = vadd.f32 0.0, %v412
    %v414 = vpop.f32.mrb[0].mxu0
    %415 = vmatprep.mubr.f32.mxu0 0.0
    %416 = vmatmul.mubr.f32.gmra.mrb[0].mxu0 %v160
    %v417 = vpop.f32.mrb[0].mxu0
    %v418 = vadd.f32 0.0, %v417
    %v419 = vpop.f32.mrb[0].mxu0
    %420 = vmatprep.mubr.f32.mxu0 0.0
    %421 = vmatmul.mubr.f32.gmra.mrb[0].mxu0 %v163
    %v422 = vpop.f32.mrb[0].mxu0
    %v423 = vadd.f32 0.0, %v422
    %v424 = vpop.f32.mrb[0].mxu0
    %425 = vmatprep.mubr.f32.mxu0 0.0
    %426 = vmatmul.mubr.f32.gmra.mrb[0].mxu0 %v166
    %v427 = vpop.f32.mrb[0].mxu0
    %v428 = vadd.f32 0.0, %v427
    %v429 = vpop.f32.mrb[0].mxu0
    %430 = vmatprep.mubr.f32.mxu0 0.0
    %431 = vmatmul.mubr.f32.gmra.mrb[0].mxu0 %v169
    %v432 = vpop.f32.mrb[0].mxu0
    %v433 = vadd.f32 0.0, %v432
    %v434 = vpop.f32.mrb[0].mxu0
    %435 = vmatprep.mubr.f32.mxu0 0.0
    %436 = vmatmul.mubr.f32.gmra.mrb[0].mxu0 %v172
    %v437 = vpop.f32.mrb[0].mxu0
    %v438 = vadd.f32 0.0, %v437
    %v439 = vpop.f32.mrb[0].mxu0
    %440 = vmatprep.mubr.f32.mxu0 0.0
    %441 = vmatmul.mubr.f32.gmra.mrb[0].mxu0 %v175
    %v442 = vpop.f32.mrb[0].mxu0
    %v443 = vadd.f32 0.0, %v442
    %v444 = vpop.f32.mrb[0].mxu0
    %445 = vmatprep.mubr.f32.mxu0 0.0
    %446 = vmatmul.mubr.f32.gmra.mrb[0].mxu0 %v178
    %v447 = vpop.f32.mrb[0].mxu0
    %v448 = vadd.f32 0.0, %v447
    %v449 = vpop.f32.mrb[0].mxu0
    %450 = vmatprep.mubr.f32.mxu0 0.0
    %451 = vmatmul.mubr.f32.gmra.mrb[0].mxu0 %v181
    %v452 = vpop.f32.mrb[0].mxu0
    %v453 = vadd.f32 0.0, %v452
    %v454 = vpop.f32.mrb[0].mxu0
    %455 = vdwg.mxu0
    %v456 = vmax.f32 %v298, 0.0
    %v457 = vmax.f32 %v303, 0.0
    %v458 = vmax.f32 %v308, 0.0
    %v459 = vmax.f32 %v313, 0.0
    %v460 = vmax.f32 %v318, 0.0
    %v461 = vmax.f32 %v323, 0.0
    %v462 = vmax.f32 %v328, 0.0
    %v463 = vmax.f32 %v333, 0.0
    %v464 = vmax.f32 %v338, 0.0
    %v465 = vmax.f32 %v343, 0.0
    %v466 = vmax.f32 %v348, 0.0
    %v467 = vmax.f32 %v353, 0.0
    %v468 = vmax.f32 %v358, 0.0
    %v469 = vmax.f32 %v363, 0.0
    %v470 = vmax.f32 %v368, 0.0
    %v471 = vmax.f32 %v373, 0.0
    %v472 = vmax.f32 %v378, 0.0
    %v473 = vmax.f32 %v383, 0.0
    %v474 = vmax.f32 %v388, 0.0
    %v475 = vmax.f32 %v393, 0.0
    %v476 = vmax.f32 %v398, 0.0
    %v477 = vmax.f32 %v403, 0.0
    %v478 = vmax.f32 %v408, 0.0
    %v479 = vmax.f32 %v413, 0.0
    %v480 = vmax.f32 %v418, 0.0
    %v481 = vmax.f32 %v423, 0.0
    %v482 = vmax.f32 %v428, 0.0
    %v483 = vmax.f32 %v433, 0.0
    %v484 = vmax.f32 %v438, 0.0
    %v485 = vmax.f32 %v443, 0.0
    %v486 = vmax.f32 %v448, 0.0
    %v487 = vmax.f32 %v453, 0.0
    %v488 = vld [vmem:[%s2] sm:$0xff]
    %v489 = vld [vmem:[%s2 + $0x8] sm:$0xff]
    %v490 = vld [vmem:[%s2 + $0x10] sm:$0xff]
    %v491 = vld [vmem:[%s2 + $0x18] sm:$0xff]
    %v492 = vld [vmem:[%s2 + $0x20] sm:$0xff]
    %v493 = vld [vmem:[%s2 + $0x28] sm:$0xff]
    %v494 = vld [vmem:[%s2 + $0x30] sm:$0xff]
    %v495 = vld [vmem:[%s2 + $0x38] sm:$0xff]
    %v496 = vld [vmem:[%s2 + $0x40] sm:$0xff]
    %v497 = vld [vmem:[%s2 + $0x48] sm:$0xff]
    %v498 = vld [vmem:[%s2 + $0x50] sm:$0xff]
    %v499 = vld [vmem:[%s2 + $0x58] sm:$0xff]
    %v500 = vld [vmem:[%s2 + $0x60] sm:$0xff]
    %v501 = vld [vmem:[%s2 + $0x68] sm:$0xff]
    %v502 = vld [vmem:[%s2 + $0x70] sm:$0xff]
    %v503 = vld [vmem:[%s2 + $0x78] sm:$0xff]
    %v504 = vld [vmem:[%s2 + $0x80] sm:$0xff]
    %v505 = vld [vmem:[%s2 + $0x88] sm:$0xff]
    %v506 = vld [vmem:[%s2 + $0x90] sm:$0xff]
    %v507 = vld [vmem:[%s2 + $0x98] sm:$0xff]
    %v508 = vld [vmem:[%s2 + $0xa0] sm:$0xff]
    %v509 = vld [vmem:[%s2 + $0xa8] sm:$0xff]
    %v510 = vld [vmem:[%s2 + $0xb0] sm:$0xff]
    %v511 = vld [vmem:[%s2 + $0xb8] sm:$0xff]
    %v512 = vld [vmem:[%s2 + $0xc0] sm:$0xff]
    %v513 = vld [vmem:[%s2 + $0xc8] sm:$0xff]
    %v514 = vld [vmem:[%s2 + $0xd0] sm:$0xff]
    %v515 = vld [vmem:[%s2 + $0xd8] sm:$0xff]
    %v516 = vld [vmem:[%s2 + $0xe0] sm:$0xff]
    %v517 = vld [vmem:[%s2 + $0xe8] sm:$0xff]
    %v518 = vld [vmem:[%s2 + $0xf0] sm:$0xff]
    %v519 = vld [vmem:[%s2 + $0xf8] sm:$0xff]
    %v520 = vld [vmem:[%s3] sm:$0xff]
    %v521 = vld [vmem:[%s3 + $0x8] sm:$0xff]
    %v522 = vld [vmem:[%s3 + $0x10] sm:$0xff]
    %v523 = vld [vmem:[%s3 + $0x18] sm:$0xff]
    %v524 = vld [vmem:[%s3 + $0x20] sm:$0xff]
    %v525 = vld [vmem:[%s3 + $0x28] sm:$0xff]
    %v526 = vld [vmem:[%s3 + $0x30] sm:$0xff]
    %v527 = vld [vmem:[%s3 + $0x38] sm:$0xff]
    %v528 = vld [vmem:[%s3 + $0x40] sm:$0xff]
    %v529 = vld [vmem:[%s3 + $0x48] sm:$0xff]
    %v530 = vld [vmem:[%s3 + $0x50] sm:$0xff]
    %v531 = vld [vmem:[%s3 + $0x58] sm:$0xff]
    %v532 = vld [vmem:[%s3 + $0x60] sm:$0xff]
    %v533 = vld [vmem:[%s3 + $0x68] sm:$0xff]
    %v534 = vld [vmem:[%s3 + $0x70] sm:$0xff]
    %v535 = vld [vmem:[%s3 + $0x78] sm:$0xff]
    %537 = vset.pattern.permute.xlu0 0
    %538 = vperm.xlu0 %537, %v520
    %v539 = vpop.permute.xlu0 %538
    %542 = vset.pattern.permute.xlu0 0
    %543 = vperm.xlu0 %542, %v521
    %v544 = vpop.permute.xlu0 %543
    %547 = vset.pattern.permute.xlu0 0
    %548 = vperm.xlu0 %547, %v522
    %v549 = vpop.permute.xlu0 %548
    %552 = vset.pattern.permute.xlu0 0
    %553 = vperm.xlu0 %552, %v523
    %v554 = vpop.permute.xlu0 %553
    %557 = vset.pattern.permute.xlu0 0
    %558 = vperm.xlu0 %557, %v524
    %v559 = vpop.permute.xlu0 %558
    %562 = vset.pattern.permute.xlu0 0
    %563 = vperm.xlu0 %562, %v525
    %v564 = vpop.permute.xlu0 %563
    %567 = vset.pattern.permute.xlu0 0
    %568 = vperm.xlu0 %567, %v526
    %v569 = vpop.permute.xlu0 %568
    %572 = vset.pattern.permute.xlu0 0
    %573 = vperm.xlu0 %572, %v527
    %v574 = vpop.permute.xlu0 %573
    %577 = vset.pattern.permute.xlu0 0
    %578 = vperm.xlu0 %577, %v528
    %v579 = vpop.permute.xlu0 %578
    %582 = vset.pattern.permute.xlu0 0
    %583 = vperm.xlu0 %582, %v529
    %v584 = vpop.permute.xlu0 %583
    %587 = vset.pattern.permute.xlu0 0
    %588 = vperm.xlu0 %587, %v530
    %v589 = vpop.permute.xlu0 %588
    %592 = vset.pattern.permute.xlu0 0
    %593 = vperm.xlu0 %592, %v531
    %v594 = vpop.permute.xlu0 %593
    %597 = vset.pattern.permute.xlu0 0
    %598 = vperm.xlu0 %597, %v532
    %v599 = vpop.permute.xlu0 %598
    %602 = vset.pattern.permute.xlu0 0
    %603 = vperm.xlu0 %602, %v533
    %v604 = vpop.permute.xlu0 %603
    %607 = vset.pattern.permute.xlu0 0
    %608 = vperm.xlu0 %607, %v534
    %v609 = vpop.permute.xlu0 %608
    %612 = vset.pattern.permute.xlu0 0
    %613 = vperm.xlu0 %612, %v535
    %v614 = vpop.permute.xlu0 %613
    %616 = vmatprep.subr.mxu0 0.0
    %617 = vmatpush1.msra.mxu0 %v456
    %618 = vmatprep.subr.mxu0 0.0
    %619 = vmatpush1.msra.mxu0 %v457
    %620 = vmatprep.subr.mxu0 0.0
    %621 = vmatpush1.msra.mxu0 %v458
    %622 = vmatprep.subr.mxu0 0.0
    %623 = vmatpush1.msra.mxu0 %v459
    %624 = vmatprep.subr.mxu0 0.0
    %625 = vmatpush1.msra.mxu0 %v460
    %626 = vmatprep.subr.mxu0 0.0
    %627 = vmatpush1.msra.mxu0 %v461
    %628 = vmatprep.subr.mxu0 0.0
    %629 = vmatpush1.msra.mxu0 %v462
    %630 = vmatprep.subr.mxu0 0.0
    %631 = vmatpush1.msra.mxu0 %v463
    %632 = vmatprep.subr.mxu0 0.0
    %633 = vmatpush1.msra.mxu0 %v464
    %634 = vmatprep.subr.mxu0 0.0
    %635 = vmatpush1.msra.mxu0 %v465
    %636 = vmatprep.subr.mxu0 0.0
    %637 = vmatpush1.msra.mxu0 %v466
    %638 = vmatprep.subr.mxu0 0.0
    %639 = vmatpush1.msra.mxu0 %v467
    %640 = vmatprep.subr.mxu0 0.0
    %641 = vmatpush1.msra.mxu0 %v468
    %642 = vmatprep.subr.mxu0 0.0
    %643 = vmatpush1.msra.mxu0 %v469
    %644 = vmatprep.subr.mxu0 0.0
    %645 = vmatpush1.msra.mxu0 %v470
    %646 = vmatprep.subr.mxu0 0.0
    %647 = vmatpush1.msra.mxu0 %v471
    %648 = vmatprep.subr.mxu0 0.0
    %649 = vmatpush1.msra.mxu0 %v472
    %650 = vmatprep.subr.mxu0 0.0
    %651 = vmatpush1.msra.mxu0 %v473
    %652 = vmatprep.subr.mxu0 0.0
    %653 = vmatpush1.msra.mxu0 %v474
    %654 = vmatprep.subr.mxu0 0.0
    %655 = vmatpush1.msra.mxu0 %v475
    %656 = vmatprep.subr.mxu0 0.0
    %657 = vmatpush1.msra.mxu0 %v476
    %658 = vmatprep.subr.mxu0 0.0
    %659 = vmatpush1.msra.mxu0 %v477
    %660 = vmatprep.subr.mxu0 0.0
    %661 = vmatpush1.msra.mxu0 %v478
    %662 = vmatprep.subr.mxu0 0.0
    %663 = vmatpush1.msra.mxu0 %v479
    %664 = vmatprep.subr.mxu0 0.0
    %665 = vmatpush1.msra.mxu0 %v480
    %666 = vmatprep.subr.mxu0 0.0
    %667 = vmatpush1.msra.mxu0 %v481
    %668 = vmatprep.subr.mxu0 0.0
    %669 = vmatpush1.msra.mxu0 %v482
    %670 = vmatprep.subr.mxu0 0.0
    %671 = vmatpush1.msra.mxu0 %v483
    %672 = vmatprep.subr.mxu0 0.0
    %673 = vmatpush1.msra.mxu0 %v484
    %674 = vmatprep.subr.mxu0 0.0
    %675 = vmatpush1.msra.mxu0 %v485
    %676 = vmatprep.subr.mxu0 0.0
    %677 = vmatpush1.msra.mxu0 %v486
    %678 = vmatprep.subr.mxu0 0.0
    %679 = vmatpush1.msra.mxu0 %v487
    %680 = vmatprep.mubr.f32.mxu0 %v489
    %681 = vmatmul.mubr.f32.gmra.mrb[0].mxu0 %v488
    %v682 = vpop.f32.mrb[0].mxu0
    %v683 = vadd.f32 %v539, %v682
    %v684 = vpop.f32.mrb[0].mxu0
    %685 = vmatprep.mubr.f32.mxu0 %v491
    %686 = vmatmul.mubr.f32.gmra.mrb[0].mxu0 %v490
    %v687 = vpop.f32.mrb[0].mxu0
    %v688 = vadd.f32 %v544, %v687
    %v689 = vpop.f32.mrb[0].mxu0
    %690 = vmatprep.mubr.f32.mxu0 %v493
    %691 = vmatmul.mubr.f32.gmra.mrb[0].mxu0 %v492
    %v692 = vpop.f32.mrb[0].mxu0
    %v693 = vadd.f32 %v549, %v692
    %v694 = vpop.f32.mrb[0].mxu0
    %695 = vmatprep.mubr.f32.mxu0 %v495
    %696 = vmatmul.mubr.f32.gmra.mrb[0].mxu0 %v494
    %v697 = vpop.f32.mrb[0].mxu0
    %v698 = vadd.f32 %v554, %v697
    %v699 = vpop.f32.mrb[0].mxu0
    %700 = vmatprep.mubr.f32.mxu0 %v497
    %701 = vmatmul.mubr.f32.gmra.mrb[0].mxu0 %v496
    %v702 = vpop.f32.mrb[0].mxu0
    %v703 = vadd.f32 %v559, %v702
    %v704 = vpop.f32.mrb[0].mxu0
    %705 = vmatprep.mubr.f32.mxu0 %v499
    %706 = vmatmul.mubr.f32.gmra.mrb[0].mxu0 %v498
    %v707 = vpop.f32.mrb[0].mxu0
    %v708 = vadd.f32 %v564, %v707
    %v709 = vpop.f32.mrb[0].mxu0
    %710 = vmatprep.mubr.f32.mxu0 %v501
    %711 = vmatmul.mubr.f32.gmra.mrb[0].mxu0 %v500
    %v712 = vpop.f32.mrb[0].mxu0
    %v713 = vadd.f32 %v569, %v712
    %v714 = vpop.f32.mrb[0].mxu0
    %715 = vmatprep.mubr.f32.mxu0 %v503
    %716 = vmatmul.mubr.f32.gmra.mrb[0].mxu0 %v502
    %v717 = vpop.f32.mrb[0].mxu0
    %v718 = vadd.f32 %v574, %v717
    %v719 = vpop.f32.mrb[0].mxu0
    %720 = vmatprep.mubr.f32.mxu0 %v505
    %721 = vmatmul.mubr.f32.gmra.mrb[0].mxu0 %v504
    %v722 = vpop.f32.mrb[0].mxu0
    %v723 = vadd.f32 %v579, %v722
    %v724 = vpop.f32.mrb[0].mxu0
    %725 = vmatprep.mubr.f32.mxu0 %v507
    %726 = vmatmul.mubr.f32.gmra.mrb[0].mxu0 %v506
    %v727 = vpop.f32.mrb[0].mxu0
    %v728 = vadd.f32 %v584, %v727
    %v729 = vpop.f32.mrb[0].mxu0
    %730 = vmatprep.mubr.f32.mxu0 %v509
    %731 = vmatmul.mubr.f32.gmra.mrb[0].mxu0 %v508
    %v732 = vpop.f32.mrb[0].mxu0
    %v733 = vadd.f32 %v589, %v732
    %v734 = vpop.f32.mrb[0].mxu0
    %735 = vmatprep.mubr.f32.mxu0 %v511
    %736 = vmatmul.mubr.f32.gmra.mrb[0].mxu0 %v510
    %v737 = vpop.f32.mrb[0].mxu0
    %v738 = vadd.f32 %v594, %v737
    %v739 = vpop.f32.mrb[0].mxu0
    %740 = vmatprep.mubr.f32.mxu0 %v513
    %741 = vmatmul.mubr.f32.gmra.mrb[0].mxu0 %v512
    %v742 = vpop.f32.mrb[0].mxu0
    %v743 = vadd.f32 %v599, %v742
    %v744 = vpop.f32.mrb[0].mxu0
    %745 = vmatprep.mubr.f32.mxu0 %v515
    %746 = vmatmul.mubr.f32.gmra.mrb[0].mxu0 %v514
    %v747 = vpop.f32.mrb[0].mxu0
    %v748 = vadd.f32 %v604, %v747
    %v749 = vpop.f32.mrb[0].mxu0
    %750 = vmatprep.mubr.f32.mxu0 %v517
    %751 = vmatmul.mubr.f32.gmra.mrb[0].mxu0 %v516
    %v752 = vpop.f32.mrb[0].mxu0
    %v753 = vadd.f32 %v609, %v752
    %v754 = vpop.f32.mrb[0].mxu0
    %755 = vmatprep.mubr.f32.mxu0 %v519
    %756 = vmatmul.mubr.f32.gmra.mrb[0].mxu0 %v518
    %v757 = vpop.f32.mrb[0].mxu0
    %v758 = vadd.f32 %v614, %v757
    %v759 = vpop.f32.mrb[0].mxu0
    %760 = vdwg.mxu0
    %v761 = vmax.f32 %v683, 0.0
    %v762 = vmax.f32 %v688, 0.0
    %v763 = vmax.f32 %v693, 0.0
    %v764 = vmax.f32 %v698, 0.0
    %v765 = vmax.f32 %v703, 0.0
    %v766 = vmax.f32 %v708, 0.0
    %v767 = vmax.f32 %v713, 0.0
    %v768 = vmax.f32 %v718, 0.0
    %v769 = vmax.f32 %v723, 0.0
    %v770 = vmax.f32 %v728, 0.0
    %v771 = vmax.f32 %v733, 0.0
    %v772 = vmax.f32 %v738, 0.0
    %v773 = vmax.f32 %v743, 0.0
    %v774 = vmax.f32 %v748, 0.0
    %v775 = vmax.f32 %v753, 0.0
    %v776 = vmax.f32 %v758, 0.0
    %v777 = vld [vmem:[%s4] sm:$0xff]
    %v778 = vld [vmem:[%s4 + $0x8] sm:$0xff]
    %v779 = vld [vmem:[%s4 + $0x10] sm:$0xff]
    %v780 = vld [vmem:[%s4 + $0x18] sm:$0xff]
    %v781 = vld [vmem:[%s4 + $0x20] sm:$0xff]
    %v782 = vld [vmem:[%s4 + $0x28] sm:$0xff]
    %v783 = vld [vmem:[%s4 + $0x30] sm:$0xff]
    %v784 = vld [vmem:[%s4 + $0x38] sm:$0xff]
    %v785 = vld [vmem:[%s5] sm:$0xff]
    %v786 = vld [vmem:[%s5 + $0x8] sm:$0xff]
    %v787 = vld [vmem:[%s5 + $0x10] sm:$0xff]
    %v788 = vld [vmem:[%s5 + $0x18] sm:$0xff]
    %v789 = vld [vmem:[%s5 + $0x20] sm:$0xff]
    %v790 = vld [vmem:[%s5 + $0x28] sm:$0xff]
    %v791 = vld [vmem:[%s5 + $0x30] sm:$0xff]
    %v792 = vld [vmem:[%s5 + $0x38] sm:$0xff]
    %794 = vset.pattern.permute.xlu0 0
    %795 = vperm.xlu0 %794, %v785
    %v796 = vpop.permute.xlu0 %795
    %799 = vset.pattern.permute.xlu0 0
    %800 = vperm.xlu0 %799, %v786
    %v801 = vpop.permute.xlu0 %800
    %804 = vset.pattern.permute.xlu0 0
    %805 = vperm.xlu0 %804, %v787
    %v806 = vpop.permute.xlu0 %805
    %809 = vset.pattern.permute.xlu0 0
    %810 = vperm.xlu0 %809, %v788
    %v811 = vpop.permute.xlu0 %810
    %814 = vset.pattern.permute.xlu0 0
    %815 = vperm.xlu0 %814, %v789
    %v816 = vpop.permute.xlu0 %815
    %819 = vset.pattern.permute.xlu0 0
    %820 = vperm.xlu0 %819, %v790
    %v821 = vpop.permute.xlu0 %820
    %824 = vset.pattern.permute.xlu0 0
    %825 = vperm.xlu0 %824, %v791
    %v826 = vpop.permute.xlu0 %825
    %829 = vset.pattern.permute.xlu0 0
    %830 = vperm.xlu0 %829, %v792
    %v831 = vpop.permute.xlu0 %830
    %833 = vmatprep.subr.mxu0 0.0
    %834 = vmatpush1.msra.mxu0 %v761
    %835 = vmatprep.subr.mxu0 0.0
    %836 = vmatpush1.msra.mxu0 %v762
    %837 = vmatprep.subr.mxu0 0.0
    %838 = vmatpush1.msra.mxu0 %v763
    %839 = vmatprep.subr.mxu0 0.0
    %840 = vmatpush1.msra.mxu0 %v764
    %841 = vmatprep.subr.mxu0 0.0
    %842 = vmatpush1.msra.mxu0 %v765
    %843 = vmatprep.subr.mxu0 0.0
    %844 = vmatpush1.msra.mxu0 %v766
    %845 = vmatprep.subr.mxu0 0.0
    %846 = vmatpush1.msra.mxu0 %v767
    %847 = vmatprep.subr.mxu0 0.0
    %848 = vmatpush1.msra.mxu0 %v768
    %849 = vmatprep.subr.mxu0 0.0
    %850 = vmatpush1.msra.mxu0 %v769
    %851 = vmatprep.subr.mxu0 0.0
    %852 = vmatpush1.msra.mxu0 %v770
    %853 = vmatprep.subr.mxu0 0.0
    %854 = vmatpush1.msra.mxu0 %v771
    %855 = vmatprep.subr.mxu0 0.0
    %856 = vmatpush1.msra.mxu0 %v772
    %857 = vmatprep.subr.mxu0 0.0
    %858 = vmatpush1.msra.mxu0 %v773
    %859 = vmatprep.subr.mxu0 0.0
    %860 = vmatpush1.msra.mxu0 %v774
    %861 = vmatprep.subr.mxu0 0.0
    %862 = vmatpush1.msra.mxu0 %v775
    %863 = vmatprep.subr.mxu0 0.0
    %864 = vmatpush1.msra.mxu0 %v776
    %865 = vmatprep.subr.mxu0 0.0
    %866 = vmatpush1.msra.mxu0 0.0
    %867 = vmatprep.subr.mxu0 0.0
    %868 = vmatpush1.msra.mxu0 0.0
    %869 = vmatprep.subr.mxu0 0.0
    %870 = vmatpush1.msra.mxu0 0.0
    %871 = vmatprep.subr.mxu0 0.0
    %872 = vmatpush1.msra.mxu0 0.0
    %873 = vmatprep.subr.mxu0 0.0
    %874 = vmatpush1.msra.mxu0 0.0
    %875 = vmatprep.subr.mxu0 0.0
    %876 = vmatpush1.msra.mxu0 0.0
    %877 = vmatprep.subr.mxu0 0.0
    %878 = vmatpush1.msra.mxu0 0.0
    %879 = vmatprep.subr.mxu0 0.0
    %880 = vmatpush1.msra.mxu0 0.0
    %881 = vmatprep.subr.mxu0 0.0
    %882 = vmatpush1.msra.mxu0 0.0
    %883 = vmatprep.subr.mxu0 0.0
    %884 = vmatpush1.msra.mxu0 0.0
    %885 = vmatprep.subr.mxu0 0.0
    %886 = vmatpush1.msra.mxu0 0.0
    %887 = vmatprep.subr.mxu0 0.0
    %888 = vmatpush1.msra.mxu0 0.0
    %889 = vmatprep.subr.mxu0 0.0
    %890 = vmatpush1.msra.mxu0 0.0
    %891 = vmatprep.subr.mxu0 0.0
    %892 = vmatpush1.msra.mxu0 0.0
    %893 = vmatprep.subr.mxu0 0.0
    %894 = vmatpush1.msra.mxu0 0.0
    %895 = vmatprep.subr.mxu0 0.0
    %896 = vmatpush1.msra.mxu0 0.0
    %897 = vmatprep.mubr.f32.mxu0 0.0
    %898 = vmatmul.mubr.f32.gmra.mrb[0].mxu0 %v777
    %v899 = vpop.f32.mrb[0].mxu0
    %v900 = vadd.f32 %v796, %v899
    %v901 = vpop.f32.mrb[0].mxu0
    %902 = vmatprep.mubr.f32.mxu0 0.0
    %903 = vmatmul.mubr.f32.gmra.mrb[0].mxu0 %v778
    %v904 = vpop.f32.mrb[0].mxu0
    %v905 = vadd.f32 %v801, %v904
    %v906 = vpop.f32.mrb[0].mxu0
    %907 = vmatprep.mubr.f32.mxu0 0.0
    %908 = vmatmul.mubr.f32.gmra.mrb[0].mxu0 %v779
    %v909 = vpop.f32.mrb[0].mxu0
    %v910 = vadd.f32 %v806, %v909
    %v911 = vpop.f32.mrb[0].mxu0
    %912 = vmatprep.mubr.f32.mxu0 0.0
    %913 = vmatmul.mubr.f32.gmra.mrb[0].mxu0 %v780
    %v914 = vpop.f32.mrb[0].mxu0
    %v915 = vadd.f32 %v811, %v914
    %v916 = vpop.f32.mrb[0].mxu0
    %917 = vmatprep.mubr.f32.mxu0 0.0
    %918 = vmatmul.mubr.f32.gmra.mrb[0].mxu0 %v781
    %v919 = vpop.f32.mrb[0].mxu0
    %v920 = vadd.f32 %v816, %v919
    %v921 = vpop.f32.mrb[0].mxu0
    %922 = vmatprep.mubr.f32.mxu0 0.0
    %923 = vmatmul.mubr.f32.gmra.mrb[0].mxu0 %v782
    %v924 = vpop.f32.mrb[0].mxu0
    %v925 = vadd.f32 %v821, %v924
    %v926 = vpop.f32.mrb[0].mxu0
    %927 = vmatprep.mubr.f32.mxu0 0.0
    %928 = vmatmul.mubr.f32.gmra.mrb[0].mxu0 %v783
    %v929 = vpop.f32.mrb[0].mxu0
    %v930 = vadd.f32 %v826, %v929
    %v931 = vpop.f32.mrb[0].mxu0
    %932 = vmatprep.mubr.f32.mxu0 0.0
    %933 = vmatmul.mubr.f32.gmra.mrb[0].mxu0 %v784
    %v934 = vpop.f32.mrb[0].mxu0
    %v935 = vadd.f32 %v831, %v934
    %v936 = vpop.f32.mrb[0].mxu0
    %937 = vdwg.mxu0
    %v938 = vmax.f32 %v900, 0.0
    %v939 = vmax.f32 %v905, 0.0
    %v940 = vmax.f32 %v910, 0.0
    %v941 = vmax.f32 %v915, 0.0
    %v942 = vmax.f32 %v920, 0.0
    %v943 = vmax.f32 %v925, 0.0
    %v944 = vmax.f32 %v930, 0.0
    %v945 = vmax.f32 %v935, 0.0
    %v946 = vld [vmem:[%s6] sm:$0xff]
    %v947 = vld [vmem:[%s6 + $0x8] sm:$0xff]
    %v948 = vld [vmem:[%s6 + $0x10] sm:$0xff]
    %v949 = vld [vmem:[%s6 + $0x18] sm:$0xff]
    %v950 = vld [vmem:[%s7] sm:$0xff]
    %v951 = vld [vmem:[%s7 + $0x8] sm:$0xff]
    %v952 = vld [vmem:[%s7 + $0x10] sm:$0xff]
    %v953 = vld [vmem:[%s7 + $0x18] sm:$0xff]
    %955 = vset.pattern.permute.xlu0 0
    %956 = vperm.xlu0 %955, %v950
    %v957 = vpop.permute.xlu0 %956
    %960 = vset.pattern.permute.xlu0 0
    %961 = vperm.xlu0 %960, %v951
    %v962 = vpop.permute.xlu0 %961
    %965 = vset.pattern.permute.xlu0 0
    %966 = vperm.xlu0 %965, %v952
    %v967 = vpop.permute.xlu0 %966
    %970 = vset.pattern.permute.xlu0 0
    %971 = vperm.xlu0 %970, %v953
    %v972 = vpop.permute.xlu0 %971
    %vm974 = vcmask 523264
    %v976 = vsel %vm974, %v946, 0
    %v979 = vsel %vm974, %v947, 0
    %v982 = vsel %vm974, %v948, 0
    %v985 = vsel %vm974, %v949, 0
    %987 = vmatprep.subr.mxu0 0.0
    %988 = vmatpush1.msra.mxu0 %v938
    %989 = vmatprep.subr.mxu0 0.0
    %990 = vmatpush1.msra.mxu0 %v939
    %991 = vmatprep.subr.mxu0 0.0
    %992 = vmatpush1.msra.mxu0 %v940
    %993 = vmatprep.subr.mxu0 0.0
    %994 = vmatpush1.msra.mxu0 %v941
    %995 = vmatprep.subr.mxu0 0.0
    %996 = vmatpush1.msra.mxu0 %v942
    %997 = vmatprep.subr.mxu0 0.0
    %998 = vmatpush1.msra.mxu0 %v943
    %999 = vmatprep.subr.mxu0 0.0
    %1000 = vmatpush1.msra.mxu0 %v944
    %1001 = vmatprep.subr.mxu0 0.0
    %1002 = vmatpush1.msra.mxu0 %v945
    %1003 = vmatprep.subr.mxu0 0.0
    %1004 = vmatpush1.msra.mxu0 0.0
    %1005 = vmatprep.subr.mxu0 0.0
    %1006 = vmatpush1.msra.mxu0 0.0
    %1007 = vmatprep.subr.mxu0 0.0
    %1008 = vmatpush1.msra.mxu0 0.0
    %1009 = vmatprep.subr.mxu0 0.0
    %1010 = vmatpush1.msra.mxu0 0.0
    %1011 = vmatprep.subr.mxu0 0.0
    %1012 = vmatpush1.msra.mxu0 0.0
    %1013 = vmatprep.subr.mxu0 0.0
    %1014 = vmatpush1.msra.mxu0 0.0
    %1015 = vmatprep.subr.mxu0 0.0
    %1016 = vmatpush1.msra.mxu0 0.0
    %1017 = vmatprep.subr.mxu0 0.0
    %1018 = vmatpush1.msra.mxu0 0.0
    %1019 = vmatprep.subr.mxu0 0.0
    %1020 = vmatpush1.msra.mxu0 0.0
    %1021 = vmatprep.subr.mxu0 0.0
    %1022 = vmatpush1.msra.mxu0 0.0
    %1023 = vmatprep.subr.mxu0 0.0
    %1024 = vmatpush1.msra.mxu0 0.0
    %1025 = vmatprep.subr.mxu0 0.0
    %1026 = vmatpush1.msra.mxu0 0.0
    %1027 = vmatprep.subr.mxu0 0.0
    %1028 = vmatpush1.msra.mxu0 0.0
    %1029 = vmatprep.subr.mxu0 0.0
    %1030 = vmatpush1.msra.mxu0 0.0
    %1031 = vmatprep.subr.mxu0 0.0
    %1032 = vmatpush1.msra.mxu0 0.0
    %1033 = vmatprep.subr.mxu0 0.0
    %1034 = vmatpush1.msra.mxu0 0.0
    %1035 = vmatprep.subr.mxu0 0.0
    %1036 = vmatpush1.msra.mxu0 0.0
    %1037 = vmatprep.subr.mxu0 0.0
    %1038 = vmatpush1.msra.mxu0 0.0
    %1039 = vmatprep.subr.mxu0 0.0
    %1040 = vmatpush1.msra.mxu0 0.0
    %1041 = vmatprep.subr.mxu0 0.0
    %1042 = vmatpush1.msra.mxu0 0.0
    %1043 = vmatprep.subr.mxu0 0.0
    %1044 = vmatpush1.msra.mxu0 0.0
    %1045 = vmatprep.subr.mxu0 0.0
    %1046 = vmatpush1.msra.mxu0 0.0
    %1047 = vmatprep.subr.mxu0 0.0
    %1048 = vmatpush1.msra.mxu0 0.0
    %1049 = vmatprep.subr.mxu0 0.0
    %1050 = vmatpush1.msra.mxu0 0.0
    %1051 = vmatprep.mubr.f32.mxu0 0.0
    %1052 = vmatmul.mubr.f32.gmra.mrb[0].mxu0 %v976
    %v1053 = vpop.f32.mrb[0].mxu0
    %v1054 = vadd.f32 %v957, %v1053
    %v1055 = vpop.f32.mrb[0].mxu0
    %1056 = vmatprep.mubr.f32.mxu0 0.0
    %1057 = vmatmul.mubr.f32.gmra.mrb[0].mxu0 %v979
    %v1058 = vpop.f32.mrb[0].mxu0
    %v1059 = vadd.f32 %v962, %v1058
    %v1060 = vpop.f32.mrb[0].mxu0
    %1061 = vmatprep.mubr.f32.mxu0 0.0
    %1062 = vmatmul.mubr.f32.gmra.mrb[0].mxu0 %v982
    %v1063 = vpop.f32.mrb[0].mxu0
    %v1064 = vadd.f32 %v967, %v1063
    %v1065 = vpop.f32.mrb[0].mxu0
    %1066 = vmatprep.mubr.f32.mxu0 0.0
    %1067 = vmatmul.mubr.f32.gmra.mrb[0].mxu0 %v985
    %v1068 = vpop.f32.mrb[0].mxu0
    %v1069 = vadd.f32 %v972, %v1068
    %v1070 = vpop.f32.mrb[0].mxu0
    %1071 = vdwg.mxu0
    %v1072 = vmax.f32 %v1054, 0.0
    %v1073 = vmax.f32 %v1059, 0.0
    %v1074 = vmax.f32 %v1064, 0.0
    %v1075 = vmax.f32 %v1069, 0.0
    %v1076 = vld [vmem:[%s8] sm:$0xff]
    %v1077 = vld [vmem:[%s8 + $0x8] sm:$0xff]
    %v1078 = vld [vmem:[%s8 + $0x10] sm:$0xff]
    %v1079 = vld [vmem:[%s8 + $0x18] sm:$0xff]
    %1081 = vset.pattern.permute.xlu0 0
    %1082 = vperm.xlu0 %1081, %v1076
    %v1083 = vpop.permute.xlu0 %1082
    %1086 = vset.pattern.permute.xlu0 0
    %1087 = vperm.xlu0 %1086, %v1077
    %v1088 = vpop.permute.xlu0 %1087
    %1091 = vset.pattern.permute.xlu0 0
    %1092 = vperm.xlu0 %1091, %v1078
    %v1093 = vpop.permute.xlu0 %1092
    %1096 = vset.pattern.permute.xlu0 0
    %1097 = vperm.xlu0 %1096, %v1079
    %v1098 = vpop.permute.xlu0 %1097
    %v1100 = vmul.f32 %v1072, %v1083
    %v1101 = vmul.f32 %v1073, %v1088
    %v1102 = vmul.f32 %v1074, %v1093
    %v1103 = vmul.f32 %v1075, %v1098
    %v1104 = vadd.f32 %v1100, %v1101
    %v1105 = vadd.f32 %v1104, %v1102
    %v1106 = vadd.f32 %v1105, %v1103
    %v1107 = vrot.slane %v1106, 4
    %v1108 = vadd.f32 %v1106, %v1107
    %v1109 = vrot.slane %v1108, 2
    %v1110 = vadd.f32 %v1108, %v1109
    %v1111 = vrot.slane %v1110, 1
    %v1112 = vadd.f32 %v1110, %v1111
    %v1113 = vld [vmem:[#allocation2] sm:$0x1]
    %1115 = vset.pattern.permute.xlu0 0
    %1116 = vperm.xlu0 %1115, %v1113
    %v1117 = vpop.permute.xlu0 %1116
    %v1119 = vlaneseq
    %v1120 = vshrl.u32 %v1119, 7
    %v1121 = vsub.s32 0, %v1120
    %v1122 = vrot.slane %v1117, %v1121
    %v1123 = vadd.f32 %v1112, %v1122
    %v1124 = vsub.f32 0.0, %v1123
    %v1125 = vmul.f32 %v1124, 1.442695
    %v1126 = vpow.pop %v1125
    %v1127 = vadd.f32 %v1126, 1.0
    %v1128 = vrcp.pop %v1127
    %v1129 = vmul.f32 1.0, %v1128
    %1130 = vst [vmem:[#allocation3] sm:$0x1] %v1129
    // Predicated region
    $region42: #{tpu_custom_call.1} parent=1 // pred_check
      _
    $region43: #{tpu_custom_call.1} parent=1 // pred_check_branch
      %1132 = sbr.rel (0) target = $region45
    $region44: #{tpu_custom_call.1} parent=1 // pred_region
      %s1134 = ssub.s32 16, 16
      %1135 = vsyncadd [#allocation4], %s1134
      %s1137 = sshll.u32 [#allocation3], 4
      %s1138 = int_to_ptr.vmem [resolvable:$true] %s1137
      %1140 = dma.vmem_to_hbm [thread:$0]  %s1138, 16, %s10, [#allocation4]
    $region45: #{tpu_custom_call.1} parent=1 // pred_fallthru
      _
    // Predicated region
    $region46: #{tpu_custom_call.1} parent=1 // pred_check
      _
    $region47: #{tpu_custom_call.1} parent=1 // pred_check_branch
      %1142 = sbr.rel (0) target = $region49
    $region48: #{tpu_custom_call.1} parent=1 // pred_region
      %1143 = dma.done [#allocation4], 16
    $region49: #{tpu_custom_call.1} parent=1 // pred_fallthru
      _
    %1144 = vsyncpa [#allocation4], 1

</llo_original>
